<compile_context>
chip_gen: v7x
topology: tpu7x:2x2x1
jax: 0.10.0
libtpu: 0.0.40
codegen_flags: <defaults>
</compile_context>

<pallas_src>
import functools

import jax
import jax.numpy as jnp
from jax import lax
from jax.experimental import pallas as pl
from jax.experimental.pallas import tpu as pltpu


def _coordatt_kernel(x_ref, mpool_ref, eh_ref, ew_ref,
                     w1_ref, b1_ref, wh_ref, bh_ref, ww_ref, bw_ref,
                     o_ref, *, H, W):
    nb, C, HW = x_ref.shape
    rows = nb * C
    f32 = jnp.float32
    dt = x_ref.dtype

    # Single load of the big tensor, kept lane-dense as (rows, HW).
    xv = x_ref[...]                                   # (nb, C, HW), native dtype
    x2 = xv.reshape(rows, HW)

    # --- fused pooling: one matmul over HW gives [pool_h | pool_w] ------------
    # mpool is a host-precomputed {0,1} one-hot (HW, H+W) in x's dtype; x goes
    # to the MXU in its native dtype, accumulation in f32.
    p = jnp.dot(x2, mpool_ref[...], preferred_element_type=f32)     # (rows, H+W)
    # Mean scaling post-matmul: first H columns are means over W, last W over H.
    col = lax.broadcasted_iota(jnp.int32, (1, H + W), 1)
    p = p * jnp.where(col < H, jnp.float32(1.0 / W), jnp.float32(1.0 / H))

    # --- conv1 (BN folded on host) + h_swish on the concatenated pooled axis --
    mip = w1_ref.shape[0]
    p3 = p.reshape(nb, C, H + W)
    w1b = jnp.broadcast_to(w1_ref[...], (nb, mip, C))
    y = jnp.einsum("nmc,nck->nmk", w1b, p3,
                   preferred_element_type=f32) + b1_ref[...][None]   # (nb,mip,H+W)
    y = y * jnp.clip(y + 3.0, 0.0, 6.0) * (1.0 / 6.0)                # h_swish
    yh, yw = y[:, :, :H], y[:, :, H:]

    # --- conv_h / conv_w (1x1) + sigmoid --------------------------------------
    whb = jnp.broadcast_to(wh_ref[...], (nb, C, mip))
    wwb = jnp.broadcast_to(ww_ref[...], (nb, C, mip))
    ah = jax.nn.sigmoid(jnp.einsum("ncm,nmk->nck", whb, yh,
                                   preferred_element_type=f32) + bh_ref[...][None])  # (nb,C,H)
    aw = jax.nn.sigmoid(jnp.einsum("ncm,nmk->nck", wwb, yw,
                                   preferred_element_type=f32) + bw_ref[...][None])  # (nb,C,W)

    # --- expand both gates over HW via MXU one-hot matmuls (gates kept in the
    #     input dtype: sigmoid outputs are in [0,1]) ---------------------------
    ah_r = ah.reshape(rows, H).astype(dt)
    aw_r = aw.reshape(rows, W).astype(dt)
    gh = jnp.dot(ah_r, eh_ref[...], preferred_element_type=dt)       # a_h[hw // W]
    gw = jnp.dot(aw_r, ew_ref[...], preferred_element_type=dt)       # a_w[hw %  W]
    gate = (gh * gw).reshape(nb, C, HW)

    # Single lane-dense gated store.
    o_ref[...] = (xv * gate).astype(o_ref.dtype)


def coord_att(x, params, *, target_block_bytes=None):
    """CoordAtt forward. x: (N, C, H, W). params: dict from make_params()."""
    N, C, H, W = x.shape
    HW = H * W
    mip = params["w1"].shape[0]
    oup = params["wh"].shape[0]
    assert oup == C, "CoordAtt gating requires oup == inp channels"

    # Fold eval-mode BatchNorm into conv1 on the host (free, exact).
    w1f = params["bn_scale"] * params["w1"]                           # (mip, C)
    b1f = params["bn_scale"] * params["b1"] + params["bn_shift"]      # (mip, 1)

    # Loop-invariant one-hot matrices, hoisted out of the kernel (built once here,
    # resident in VMEM across all grid steps via a zero index_map).
    dt = x.dtype
    hw_i = jnp.arange(HW, dtype=jnp.int32)
    h_of = hw_i // W
    w_of = hw_i % W
    mpool = jnp.concatenate(
        [(h_of[:, None] == jnp.arange(H, dtype=jnp.int32)[None, :]),
         (w_of[:, None] == jnp.arange(W, dtype=jnp.int32)[None, :])],
        axis=1).astype(dt)                                            # (HW, H+W)
    eh = (jnp.arange(H, dtype=jnp.int32)[:, None] == h_of[None, :]).astype(dt)  # (H, HW)
    ew = (jnp.arange(W, dtype=jnp.int32)[:, None] == w_of[None, :]).astype(dt)  # (W, HW)

    # Lane-dense layout: collapse (H, W) -> HW (free view on contiguous NCHW).
    # TODO(synk): for v5e with HW % 128 != 0 (e.g. 56x56), zero-pad HW up to a
    # multiple of 128 (with zeroed one-hot rows/cols) to keep all stores full-lane.
    x2 = x.reshape(N, C, HW)

    # Generation-aware sizing from detected VMEM capacity.
    try:
        vmem_cap = int(pltpu.get_tpu_info().vmem_capacity_bytes)
    except Exception:
        vmem_cap = 64 << 20                      # conservative (v7x per-TC) fallback
    if target_block_bytes is None:
        target_block_bytes = max(1 << 20, vmem_cap // 16)   # ~4 MiB v7x, ~8 MiB v5e/v6e

    per_elem = C * HW * x.dtype.itemsize
    budget_nb = max(1, target_block_bytes // per_elem)
    divisors = [d for d in range(1, N + 1) if N % d == 0]
    nb = max(d for d in divisors if d <= budget_nb)
    # Keep >= min(4, N) grid steps so each v7x TensorCore gets >= 2 blocks and the
    # input DMA can double-buffer instead of being fully exposed.
    min_steps = min(4, N)
    while N // nb < min_steps:
        nb = max(d for d in divisors if d < nb)
    grid = (N // nb,)

    # VMEM accounting: in + out blocks double-buffered (4x block) + gate/relayout
    # temporaries in the input dtype (~4x block) + resident one-hot constants,
    # with margin, capped at 75% of physical VMEM.
    block_bytes = nb * per_elem
    const_bytes = 2 * HW * (H + W) * dt.itemsize
    needed = 8 * block_bytes + 2 * const_bytes + (4 << 20)
    vmem_limit = int(min(max(needed, 16 << 20), int(0.75 * vmem_cap)))

    zero2 = lambda i: (0, 0)
    call = pl.pallas_call(
        functools.partial(_coordatt_kernel, H=H, W=W),
        out_shape=jax.ShapeDtypeStruct((N, C, HW), x.dtype),
        grid_spec=pltpu.PrefetchScalarGridSpec(
            num_scalar_prefetch=0,
            grid=grid,
            in_specs=[
                pl.BlockSpec((nb, C, HW), lambda i: (i, 0, 0)),   # x (lane-dense)
                pl.BlockSpec((HW, H + W), zero2),                 # fused pooling one-hot
                pl.BlockSpec((H, HW), zero2),                     # h-gate expansion one-hot
                pl.BlockSpec((W, HW), zero2),                     # w-gate expansion one-hot
                pl.BlockSpec((mip, C), zero2),                    # conv1 weight (BN folded)
                pl.BlockSpec((mip, 1), zero2),                    # conv1 bias   (BN folded)
                pl.BlockSpec((oup, mip), zero2),                  # conv_h weight
                pl.BlockSpec((oup, 1), zero2),                    # conv_h bias
                pl.BlockSpec((oup, mip), zero2),                  # conv_w weight
                pl.BlockSpec((oup, 1), zero2),                    # conv_w bias
            ],
            out_specs=pl.BlockSpec((nb, C, HW), lambda i: (i, 0, 0)),
        ),
        input_output_aliases={0: 0},   # elementwise gating per tile: reuse x's HBM
        compiler_params=pltpu.CompilerParams(
            dimension_semantics=("parallel",),
            vmem_limit_bytes=vmem_limit),
    )
    # Donate x2 so the in/out alias is honored without an extra HBM copy.
    out2 = jax.jit(call, donate_argnums=(0,))(
        x2, mpool, eh, ew, w1f, b1f,
        params["wh"], params["bh"], params["ww"], params["bw"])
    return out2.reshape(N, C, H, W)


def make_params(key, inp, oup, reduction=32):
    """Deterministic synthetic parameters matching CoordAtt.__init__ shapes."""
    mip = max(8, inp // reduction)
    ks = jax.random.split(key, 8)
    w1 = jax.random.normal(ks[0], (mip, inp), jnp.float32) * 0.5
    b1 = jax.random.normal(ks[1], (mip, 1), jnp.float32) * 0.1
    wh = jax.random.normal(ks[2], (oup, mip), jnp.float32) * 0.5
    bh = jax.random.normal(ks[3], (oup, 1), jnp.float32) * 0.1
    ww = jax.random.normal(ks[4], (oup, mip), jnp.float32) * 0.5
    bw = jax.random.normal(ks[5], (oup, 1), jnp.float32) * 0.1
    # BatchNorm2d(mip) eval-mode params, folded into scale/shift
    gamma = 1.0 + 0.1 * jax.random.normal(ks[6], (mip, 1), jnp.float32)
    beta = 0.1 * jax.random.normal(ks[7], (mip, 1), jnp.float32)
    running_mean = jnp.linspace(-0.2, 0.2, mip, dtype=jnp.float32).reshape(mip, 1)
    running_var = jnp.linspace(0.5, 1.5, mip, dtype=jnp.float32).reshape(mip, 1)
    eps = 1e-5
    bn_scale = gamma / jnp.sqrt(running_var + eps)
    bn_shift = beta - running_mean * bn_scale
    return dict(w1=w1, b1=b1, bn_scale=bn_scale, bn_shift=bn_shift,
                wh=wh, bh=bh, ww=ww, bw=bw)


def coord_att_ref(x, p):
    """Pure-JAX reference replicating the PyTorch forward (eval-mode BN)."""
    n, c, h, w = x.shape
    x_h = jnp.mean(x, axis=3, keepdims=True)                        # (N,C,H,1)
    x_w = jnp.mean(x, axis=2, keepdims=True).transpose(0, 1, 3, 2)  # (N,C,W,1)
    y = jnp.concatenate([x_h, x_w], axis=2)[..., 0]                 # (N,C,H+W)
    y = jnp.einsum("mc,nck->nmk", p["w1"], y) + p["b1"][None]
    y = y * p["bn_scale"][None] + p["bn_shift"][None]
    y = y * jnp.clip(y + 3.0, 0.0, 6.0) / 6.0
    yh, yw = y[:, :, :h], y[:, :, h:]
    a_h = jax.nn.sigmoid(jnp.einsum("om,nmk->nok", p["wh"], yh) + p["bh"][None])  # (N,O,H)
    a_w = jax.nn.sigmoid(jnp.einsum("om,nmk->nok", p["ww"], yw) + p["bw"][None])  # (N,O,W)
    return x * a_h[:, :, :, None] * a_w[:, :, None, :]


if __name__ == "__main__":
    key = jax.random.PRNGKey(0)
    kx, kp = jax.random.split(key)

    N, C, H, W = 2, 4, 16, 16           # inp = oup = 4, reduction=32 -> mip = 8
    x = jax.random.normal(kx, (N, C, H, W), jnp.float32)
    params = make_params(kp, inp=C, oup=C, reduction=32)

    out = coord_att(x, params)
    out = jax.block_until_ready(out)

    ref = coord_att_ref(x, params)
    assert out.shape == (N, C, H, W)
    # Tolerance covers MXU pass decomposition of f32 matmuls vs. the exact-mean
    # reference; structural/layout bugs would show up as O(1) differences.
    assert jnp.allclose(out, ref, rtol=1e-3, atol=1e-3), "mismatch vs reference"

    print("KERNEL_OK")
</pallas_src>

<mosaic_0001>
module attributes {stable_mosaic.version = 11 : i64} {
  func.func @_coordatt_kernel(%arg0: i32, %arg1: memref<1x4x256xf32, #tpu.memory_space<vmem>>, %arg2: memref<256x32xf32, #tpu.memory_space<vmem>>, %arg3: memref<16x256xf32, #tpu.memory_space<vmem>>, %arg4: memref<16x256xf32, #tpu.memory_space<vmem>>, %arg5: memref<8x4xf32, #tpu.memory_space<vmem>>, %arg6: memref<8x1xf32, #tpu.memory_space<vmem>>, %arg7: memref<4x8xf32, #tpu.memory_space<vmem>>, %arg8: memref<4x1xf32, #tpu.memory_space<vmem>>, %arg9: memref<4x8xf32, #tpu.memory_space<vmem>>, %arg10: memref<4x1xf32, #tpu.memory_space<vmem>>, %arg11: memref<1x4x256xf32, #tpu.memory_space<vmem>>) attributes {dimension_semantics = [#tpu.dimension_semantics<parallel>], iteration_bounds = array<i64: 2>, scalar_prefetch = 0 : i64, scratch_operands = 0 : i64, tpu.core_type = #tpu.core_type<tc>, window_params = [{transform_indices = @transform_0, window_bounds = array<i64: 1, 4, 256>}, {pipeline_mode = #tpu.pipeline_mode<synchronous>, transform_indices = @transform_1, window_bounds = array<i64: 256, 32>}, {pipeline_mode = #tpu.pipeline_mode<synchronous>, transform_indices = @transform_2, window_bounds = array<i64: 16, 256>}, {pipeline_mode = #tpu.pipeline_mode<synchronous>, transform_indices = @transform_3, window_bounds = array<i64: 16, 256>}, {pipeline_mode = #tpu.pipeline_mode<synchronous>, transform_indices = @transform_4, window_bounds = array<i64: 8, 4>}, {pipeline_mode = #tpu.pipeline_mode<synchronous>, transform_indices = @transform_5, window_bounds = array<i64: 8, 1>}, {pipeline_mode = #tpu.pipeline_mode<synchronous>, transform_indices = @transform_6, window_bounds = array<i64: 4, 8>}, {pipeline_mode = #tpu.pipeline_mode<synchronous>, transform_indices = @transform_7, window_bounds = array<i64: 4, 1>}, {pipeline_mode = #tpu.pipeline_mode<synchronous>, transform_indices = @transform_8, window_bounds = array<i64: 4, 8>}, {pipeline_mode = #tpu.pipeline_mode<synchronous>, transform_indices = @transform_9, window_bounds = array<i64: 4, 1>}, {transform_indices = @transform_10, window_bounds = array<i64: 1, 4, 256>}]} {
    %c0 = arith.constant 0 : index
    %c0_0 = arith.constant 0 : index
    %c0_1 = arith.constant 0 : index
    %0 = vector.load %arg1[%c0, %c0_0, %c0_1] : memref<1x4x256xf32, #tpu.memory_space<vmem>>, vector<1x4x256xf32>
    %1 = vector.shape_cast %0 : vector<1x4x256xf32> to vector<4x256xf32>
    %c0_2 = arith.constant 0 : index
    %c0_3 = arith.constant 0 : index
    %2 = vector.load %arg2[%c0_2, %c0_3] : memref<256x32xf32, #tpu.memory_space<vmem>>, vector<256x32xf32>
    %cst = arith.constant dense<0.000000e+00> : vector<4x32xf32>
    %3 = tpu.matmul %1, %2, %cst {dimension_numbers = #tpu.dot_dimension_numbers<[1], [0], [0], [1], [0, 0, 1, 1], [], []>} : vector<4x256xf32>, vector<256x32xf32>, vector<4x32xf32> -> vector<4x32xf32>
    %4 = tpu.iota {dimensions = array<i32: 1>} : vector<1x32xi32>
    %c16_i32 = arith.constant 16 : i32
    %5 = vector.broadcast %c16_i32 : i32 to vector<1x32xi32>
    %6 = arith.cmpi slt, %4, %5 : vector<1x32xi32>
    %cst_4 = arith.constant 6.250000e-02 : f32
    %cst_5 = arith.constant 6.250000e-02 : f32
    %7 = vector.broadcast %cst_4 : f32 to vector<1x32xf32>
    %8 = vector.broadcast %cst_5 : f32 to vector<1x32xf32>
    %9 = arith.select %6, %7, %8 : vector<1x32xi1>, vector<1x32xf32>
    %10 = vector.broadcast %9 : vector<1x32xf32> to vector<4x32xf32>
    %11 = arith.mulf %3, %10 : vector<4x32xf32>
    %12 = vector.shape_cast %11 : vector<4x32xf32> to vector<1x4x32xf32>
    %c0_6 = arith.constant 0 : index
    %c0_7 = arith.constant 0 : index
    %13 = vector.load %arg5[%c0_6, %c0_7] : memref<8x4xf32, #tpu.memory_space<vmem>>, vector<8x4xf32>
    %14 = vector.shape_cast %13 : vector<8x4xf32> to vector<1x8x4xf32>
    "tpu.trace_start"() <{level = 10 : i32, message = "nmc,nck->nmk"}> : () -> ()
    %cst_8 = arith.constant dense<0.000000e+00> : vector<1x8x32xf32>
    %15 = tpu.matmul %14, %12, %cst_8 {dimension_numbers = #tpu.dot_dimension_numbers<[2], [1], [1], [2], [0, 0, 0, 1, 1, 2], [0], [0]>} : vector<1x8x4xf32>, vector<1x4x32xf32>, vector<1x8x32xf32> -> vector<1x8x32xf32>
    "tpu.trace_stop"() : () -> ()
    %c0_9 = arith.constant 0 : index
    %c0_10 = arith.constant 0 : index
    %16 = vector.load %arg6[%c0_9, %c0_10] : memref<8x1xf32, #tpu.memory_space<vmem>>, vector<8x1xf32>
    %17 = vector.shape_cast %16 : vector<8x1xf32> to vector<1x8x1xf32>
    %18 = vector.broadcast %17 : vector<1x8x1xf32> to vector<1x8x32xf32>
    %19 = arith.addf %15, %18 : vector<1x8x32xf32>
    %cst_11 = arith.constant 3.000000e+00 : f32
    %20 = vector.broadcast %cst_11 : f32 to vector<1x8x32xf32>
    %21 = arith.addf %19, %20 : vector<1x8x32xf32>
    %cst_12 = arith.constant 0.000000e+00 : f32
    %cst_13 = arith.constant 6.000000e+00 : f32
    %22 = vector.broadcast %cst_12 : f32 to vector<1x8x32xf32>
    %23 = arith.maximumf %22, %21 : vector<1x8x32xf32>
    %24 = vector.broadcast %cst_13 : f32 to vector<1x8x32xf32>
    %25 = arith.minimumf %24, %23 : vector<1x8x32xf32>
    %26 = arith.mulf %19, %25 : vector<1x8x32xf32>
    %cst_14 = arith.constant 0.166666672 : f32
    %27 = vector.broadcast %cst_14 : f32 to vector<1x8x32xf32>
    %28 = arith.mulf %26, %27 : vector<1x8x32xf32>
    %29 = vector.extract_strided_slice %28 {offsets = [0, 0, 0], sizes = [1, 8, 16], strides = [1, 1, 1]} : vector<1x8x32xf32> to vector<1x8x16xf32>
    %30 = vector.extract_strided_slice %28 {offsets = [0, 0, 16], sizes = [1, 8, 16], strides = [1, 1, 1]} : vector<1x8x32xf32> to vector<1x8x16xf32>
    %c0_15 = arith.constant 0 : index
    %c0_16 = arith.constant 0 : index
    %31 = vector.load %arg7[%c0_15, %c0_16] : memref<4x8xf32, #tpu.memory_space<vmem>>, vector<4x8xf32>
    %32 = vector.shape_cast %31 : vector<4x8xf32> to vector<1x4x8xf32>
    %c0_17 = arith.constant 0 : index
    %c0_18 = arith.constant 0 : index
    %33 = vector.load %arg9[%c0_17, %c0_18] : memref<4x8xf32, #tpu.memory_space<vmem>>, vector<4x8xf32>
    %34 = vector.shape_cast %33 : vector<4x8xf32> to vector<1x4x8xf32>
    "tpu.trace_start"() <{level = 10 : i32, message = "ncm,nmk->nck"}> : () -> ()
    %cst_19 = arith.constant dense<0.000000e+00> : vector<1x4x16xf32>
    %35 = tpu.matmul %32, %29, %cst_19 {dimension_numbers = #tpu.dot_dimension_numbers<[2], [1], [1], [2], [0, 0, 0, 1, 1, 2], [0], [0]>} : vector<1x4x8xf32>, vector<1x8x16xf32>, vector<1x4x16xf32> -> vector<1x4x16xf32>
    "tpu.trace_stop"() : () -> ()
    %c0_20 = arith.constant 0 : index
    %c0_21 = arith.constant 0 : index
    %36 = vector.load %arg8[%c0_20, %c0_21] : memref<4x1xf32, #tpu.memory_space<vmem>>, vector<4x1xf32>
    %37 = vector.shape_cast %36 : vector<4x1xf32> to vector<1x4x1xf32>
    %38 = vector.broadcast %37 : vector<1x4x1xf32> to vector<1x4x16xf32>
    %39 = arith.addf %35, %38 : vector<1x4x16xf32>
    %40 = arith.negf %39 : vector<1x4x16xf32>
    %41 = math.exp %40 : vector<1x4x16xf32>
    %cst_22 = arith.constant 1.000000e+00 : f32
    %42 = vector.broadcast %cst_22 : f32 to vector<1x4x16xf32>
    %43 = arith.addf %42, %41 : vector<1x4x16xf32>
    %44 = arith.divf %42, %43 : vector<1x4x16xf32>
    "tpu.trace_start"() <{level = 10 : i32, message = "ncm,nmk->nck"}> : () -> ()
    %cst_23 = arith.constant dense<0.000000e+00> : vector<1x4x16xf32>
    %45 = tpu.matmul %34, %30, %cst_23 {dimension_numbers = #tpu.dot_dimension_numbers<[2], [1], [1], [2], [0, 0, 0, 1, 1, 2], [0], [0]>} : vector<1x4x8xf32>, vector<1x8x16xf32>, vector<1x4x16xf32> -> vector<1x4x16xf32>
    "tpu.trace_stop"() : () -> ()
    %c0_24 = arith.constant 0 : index
    %c0_25 = arith.constant 0 : index
    %46 = vector.load %arg10[%c0_24, %c0_25] : memref<4x1xf32, #tpu.memory_space<vmem>>, vector<4x1xf32>
    %47 = vector.shape_cast %46 : vector<4x1xf32> to vector<1x4x1xf32>
    %48 = vector.broadcast %47 : vector<1x4x1xf32> to vector<1x4x16xf32>
    %49 = arith.addf %45, %48 : vector<1x4x16xf32>
    %50 = arith.negf %49 : vector<1x4x16xf32>
    %51 = math.exp %50 : vector<1x4x16xf32>
    %cst_26 = arith.constant 1.000000e+00 : f32
    %52 = vector.broadcast %cst_26 : f32 to vector<1x4x16xf32>
    %53 = arith.addf %52, %51 : vector<1x4x16xf32>
    %54 = arith.divf %52, %53 : vector<1x4x16xf32>
    %55 = vector.shape_cast %44 : vector<1x4x16xf32> to vector<4x16xf32>
    %56 = vector.shape_cast %54 : vector<1x4x16xf32> to vector<4x16xf32>
    %c0_27 = arith.constant 0 : index
    %c0_28 = arith.constant 0 : index
    %57 = vector.load %arg3[%c0_27, %c0_28] : memref<16x256xf32, #tpu.memory_space<vmem>>, vector<16x256xf32>
    %cst_29 = arith.constant dense<0.000000e+00> : vector<4x256xf32>
    %58 = tpu.matmul %55, %57, %cst_29 {dimension_numbers = #tpu.dot_dimension_numbers<[1], [0], [0], [1], [0, 0, 1, 1], [], []>} : vector<4x16xf32>, vector<16x256xf32>, vector<4x256xf32> -> vector<4x256xf32>
    %c0_30 = arith.constant 0 : index
    %c0_31 = arith.constant 0 : index
    %59 = vector.load %arg4[%c0_30, %c0_31] : memref<16x256xf32, #tpu.memory_space<vmem>>, vector<16x256xf32>
    %cst_32 = arith.constant dense<0.000000e+00> : vector<4x256xf32>
    %60 = tpu.matmul %56, %59, %cst_32 {dimension_numbers = #tpu.dot_dimension_numbers<[1], [0], [0], [1], [0, 0, 1, 1], [], []>} : vector<4x16xf32>, vector<16x256xf32>, vector<4x256xf32> -> vector<4x256xf32>
    %61 = arith.mulf %58, %60 : vector<4x256xf32>
    %62 = vector.shape_cast %61 : vector<4x256xf32> to vector<1x4x256xf32>
    %63 = arith.mulf %0, %62 : vector<1x4x256xf32>
    %c0_33 = arith.constant 0 : index
    %c0_34 = arith.constant 0 : index
    %c0_35 = arith.constant 0 : index
    %64 = vector.load %arg11[%c0_33, %c0_34, %c0_35] : memref<1x4x256xf32, #tpu.memory_space<vmem>>, vector<1x4x256xf32>
    tpu.vector_store %arg11[%c0_33, %c0_34, %c0_35], %63 {strides = array<i32>} : memref<1x4x256xf32, #tpu.memory_space<vmem>>, vector<1x4x256xf32>,
    return
  }
  func.func @transform_0(%arg0: i32) -> (i32, i32, i32) {
    %c0_i32 = arith.constant 0 : i32
    %c0_i32_0 = arith.constant 0 : i32
    %c0_i32_1 = arith.constant 0 : i32
    return %arg0, %c0_i32, %c0_i32_0 : i32, i32, i32
  }
  func.func @transform_1(%arg0: i32) -> (i32, i32) {
    %c0_i32 = arith.constant 0 : i32
    %c0_i32_0 = arith.constant 0 : i32
    %c0_i32_1 = arith.constant 0 : i32
    return %c0_i32, %c0_i32_0 : i32, i32
  }
  func.func @transform_2(%arg0: i32) -> (i32, i32) {
    %c0_i32 = arith.constant 0 : i32
    %c0_i32_0 = arith.constant 0 : i32
    %c0_i32_1 = arith.constant 0 : i32
    return %c0_i32, %c0_i32_0 : i32, i32
  }
  func.func @transform_3(%arg0: i32) -> (i32, i32) {
    %c0_i32 = arith.constant 0 : i32
    %c0_i32_0 = arith.constant 0 : i32
    %c0_i32_1 = arith.constant 0 : i32
    return %c0_i32, %c0_i32_0 : i32, i32
  }
  func.func @transform_4(%arg0: i32) -> (i32, i32) {
    %c0_i32 = arith.constant 0 : i32
    %c0_i32_0 = arith.constant 0 : i32
    %c0_i32_1 = arith.constant 0 : i32
    return %c0_i32, %c0_i32_0 : i32, i32
  }
  func.func @transform_5(%arg0: i32) -> (i32, i32) {
    %c0_i32 = arith.constant 0 : i32
    %c0_i32_0 = arith.constant 0 : i32
    %c0_i32_1 = arith.constant 0 : i32
    return %c0_i32, %c0_i32_0 : i32, i32
  }
  func.func @transform_6(%arg0: i32) -> (i32, i32) {
    %c0_i32 = arith.constant 0 : i32
    %c0_i32_0 = arith.constant 0 : i32
    %c0_i32_1 = arith.constant 0 : i32
    return %c0_i32, %c0_i32_0 : i32, i32
  }
  func.func @transform_7(%arg0: i32) -> (i32, i32) {
    %c0_i32 = arith.constant 0 : i32
    %c0_i32_0 = arith.constant 0 : i32
    %c0_i32_1 = arith.constant 0 : i32
    return %c0_i32, %c0_i32_0 : i32, i32
  }
  func.func @transform_8(%arg0: i32) -> (i32, i32) {
    %c0_i32 = arith.constant 0 : i32
    %c0_i32_0 = arith.constant 0 : i32
    %c0_i32_1 = arith.constant 0 : i32
    return %c0_i32, %c0_i32_0 : i32, i32
  }
  func.func @transform_9(%arg0: i32) -> (i32, i32) {
    %c0_i32 = arith.constant 0 : i32
    %c0_i32_0 = arith.constant 0 : i32
    %c0_i32_1 = arith.constant 0 : i32
    return %c0_i32, %c0_i32_0 : i32, i32
  }
  func.func @transform_10(%arg0: i32) -> (i32, i32, i32) {
    %c0_i32 = arith.constant 0 : i32
    %c0_i32_0 = arith.constant 0 : i32
    %c0_i32_1 = arith.constant 0 : i32
    return %arg0, %c0_i32, %c0_i32_0 : i32, i32, i32
  }
}

</mosaic_0001>

<llo_original>
// kernel: tpu_custom_call.1
$region0: #{tpu_custom_call.1}
  #allocation0 [shape = 'u32[]', space=smem, size = 0x4, offset = 0x4, fixed_abs, tag = 'smem constant byte address 0x4 - core index']
  #allocation1 [shape = 'u32[144,128]{1,0:T(1,128)}', space=vmem, size = 0x12000, scoped, tag = 'internal scratch']
  %s0 = inlined_call_operand.hbm [shape: f32[2,4,256], index: 0, kind: input, shape index: {}, may-alias: {0,10}]
  %s1 = inlined_call_operand.vmem [shape: f32[256,32], index: 1, kind: input, shape index: {}]
  %s2 = inlined_call_operand.vmem [shape: f32[16,256], index: 2, kind: input, shape index: {}]
  %s3 = inlined_call_operand.vmem [shape: f32[16,256], index: 3, kind: input, shape index: {}]
  %s4 = inlined_call_operand.vmem [shape: f32[8,4], index: 4, kind: input, shape index: {}]
  %s5 = inlined_call_operand.vmem [shape: f32[8,1], index: 5, kind: input, shape index: {}]
  %s6 = inlined_call_operand.vmem [shape: f32[4,8], index: 6, kind: input, shape index: {}]
  %s7 = inlined_call_operand.vmem [shape: f32[4,1], index: 7, kind: input, shape index: {}]
  %s8 = inlined_call_operand.vmem [shape: f32[4,8], index: 8, kind: input, shape index: {}]
  %s9 = inlined_call_operand.vmem [shape: f32[4,1], index: 9, kind: input, shape index: {}]
  %s10 = inlined_call_operand.hbm [shape: f32[2,4,256], index: 10, kind: output, shape index: {}, may-alias: {0,10}]
  %s11 = sld [smem:[#allocation0]]
  $region77: #{tpu_custom_call.1} parent=0
    _
  %s13 = ssub.s32 1, %s11
  %s14 = scalar_select 0, %s13, %s11
  $region1: #{tpu_custom_call.1} parent=0
    #allocation2 [shape = 'u8[8192]{0}', space=vmem, size = 0x2000, scoped, tag = 'input window, operand 0']
    #allocation3 [shape = 's32[2]{0}', space=sflag, size = 0x8, scoped, tag = 'scoped memory for tpu_custom_call.1']
    #allocation4 [shape = 's32[2]{0}', space=sflag, size = 0x8, scoped, tag = 'scoped memory for tpu_custom_call.1']
    #allocation5 [shape = 'u8[8192]{0}', space=vmem, size = 0x2000, scoped, tag = 'output window, operand 0']
    %15 = vsyncpa [#allocation3], 0
    %s16 = scalar_lea.sflag [#allocation3], 1
    %17 = vsyncpa %s16, 0
    %18 = vsyncpa [#allocation4], 0
    %s19 = scalar_lea.sflag [#allocation4], 1
    %20 = vsyncpa %s19, 0
    loop: start=0, step=1, limit=4
    $region2: #{tpu_custom_call.1} parent=1 // loop_pre_header
      _
    $region3: #{tpu_custom_call.1} parent=1 // loop_header
      %s22 = sphi 0, %s26
      %p23 = scmp.ge.s32.totalorder %s22, 4
      %s32 = sphi 0, %s34
      %s35 = sphi 0, %s32
      %s36 = sphi 0, %s35
      %s52 = sphi 0, %s36
      %s56 = sphi 0, %s56
      %s58 = sphi 0, %s56
      %s59 = sphi 0, %s58
      %s73 = sphi 0, %s59
      %s77 = sphi 0, %s77
      %s79 = sphi 0, %s77
      %s80 = sphi 0, %s79
      %s94 = sphi 0, %s80
      %s98 = sphi 0, %s98
      %s100 = sphi 0, %s98
      %s101 = sphi 0, %s100
      %s115 = sphi 0, %s101
      %s119 = sphi 0, %s119
      %s121 = sphi 0, %s119
      %s122 = sphi 0, %s121
      %s136 = sphi 0, %s122
      %s140 = sphi 0, %s140
      %s142 = sphi 0, %s140
      %s143 = sphi 0, %s142
      %s157 = sphi 0, %s143
      %s161 = sphi 0, %s161
      %s163 = sphi 0, %s161
      %s164 = sphi 0, %s163
      %s178 = sphi 0, %s164
      %s182 = sphi 0, %s182
      %s184 = sphi 0, %s182
      %s185 = sphi 0, %s184
      %s199 = sphi 0, %s185
      %s203 = sphi 0, %s203
      %s205 = sphi 0, %s203
      %s206 = sphi 0, %s205
      %s220 = sphi 0, %s206
      %s224 = sphi 0, %s224
      %s226 = sphi 0, %s224
      %s227 = sphi 0, %s226
      %s241 = sphi 0, %s227
      %s247 = sphi 0, %s249
      %s250 = sphi 0, %s247
      %s251 = sphi 0, %s250
      %s267 = sphi 0, %s251
    $region4: #{tpu_custom_call.1} parent=1 // loop_header_branch
      %25 = sbr.rel (%p23) target = $region8
    $region5: #{tpu_custom_call.1} parent=1 // loop_body
      %s27 = ssub.s32 %s22, 1
      %s28 = ssub.s32 %s22, 2
      %s29 = sadd.s32 %s22, 1
      %s30 = ssub.s32 %s22, %s29
      %p31 = scmp.eq.s32.totalorder %s30, 0
      %s33 = sadd.s32 %s32, 1
      %s34 = scalar_select %p31, %s32, %s33
      %p37 = pneg %p31
      %p38 = scmp.eq.s32.totalorder %s22, 1
      %p39 = por %p37, %p38
      %p40 = scmp.ne.s32.totalorder %s32, %s35
      %p41 = scmp.eq.s32.totalorder %s22, 0
      %p42 = por %p40, %p41
      %p43 = scmp.ne.s32.totalorder %s32, %s35
      %p44 = scmp.eq.s32.totalorder %s27, 1
      %p45 = por %p43, %p44
      %p46 = scmp.ne.s32.totalorder %s35, %s36
      %p47 = scmp.eq.s32.totalorder %s27, 0
      %p48 = por %p46, %p47
      %p49 = scmp.ne.s32.totalorder %s35, %s36
      %p50 = scmp.eq.s32.totalorder %s28, 1
      %p51 = por %p49, %p50
      %p53 = scmp.ne.s32.totalorder %s36, %s52
      %p54 = scmp.eq.s32.totalorder %s28, 0
      %p55 = por %p53, %p54
      %s57 = sadd.s32 %s56, 1
      %p60 = scmp.eq.s32.totalorder %s22, 1
      %p61 = scmp.ne.s32.totalorder %s56, %s58
      %p62 = scmp.eq.s32.totalorder %s22, 0
      %p63 = por %p61, %p62
      %p64 = scmp.ne.s32.totalorder %s56, %s58
      %p65 = scmp.eq.s32.totalorder %s27, 1
      %p66 = por %p64, %p65
      %p67 = scmp.ne.s32.totalorder %s58, %s59
      %p68 = scmp.eq.s32.totalorder %s27, 0
      %p69 = por %p67, %p68
      %p70 = scmp.ne.s32.totalorder %s58, %s59
      %p71 = scmp.eq.s32.totalorder %s28, 1
      %p72 = por %p70, %p71
      %p74 = scmp.ne.s32.totalorder %s59, %s73
      %p75 = scmp.eq.s32.totalorder %s28, 0
      %p76 = por %p74, %p75
      %s78 = sadd.s32 %s77, 1
      %p81 = scmp.eq.s32.totalorder %s22, 1
      %p82 = scmp.ne.s32.totalorder %s77, %s79
      %p83 = scmp.eq.s32.totalorder %s22, 0
      %p84 = por %p82, %p83
      %p85 = scmp.ne.s32.totalorder %s77, %s79
      %p86 = scmp.eq.s32.totalorder %s27, 1
      %p87 = por %p85, %p86
      %p88 = scmp.ne.s32.totalorder %s79, %s80
      %p89 = scmp.eq.s32.totalorder %s27, 0
      %p90 = por %p88, %p89
      %p91 = scmp.ne.s32.totalorder %s79, %s80
      %p92 = scmp.eq.s32.totalorder %s28, 1
      %p93 = por %p91, %p92
      %p95 = scmp.ne.s32.totalorder %s80, %s94
      %p96 = scmp.eq.s32.totalorder %s28, 0
      %p97 = por %p95, %p96
      %s99 = sadd.s32 %s98, 1
      %p102 = scmp.eq.s32.totalorder %s22, 1
      %p103 = scmp.ne.s32.totalorder %s98, %s100
      %p104 = scmp.eq.s32.totalorder %s22, 0
      %p105 = por %p103, %p104
      %p106 = scmp.ne.s32.totalorder %s98, %s100
      %p107 = scmp.eq.s32.totalorder %s27, 1
      %p108 = por %p106, %p107
      %p109 = scmp.ne.s32.totalorder %s100, %s101
      %p110 = scmp.eq.s32.totalorder %s27, 0
      %p111 = por %p109, %p110
      %p112 = scmp.ne.s32.totalorder %s100, %s101
      %p113 = scmp.eq.s32.totalorder %s28, 1
      %p114 = por %p112, %p113
      %p116 = scmp.ne.s32.totalorder %s101, %s115
      %p117 = scmp.eq.s32.totalorder %s28, 0
      %p118 = por %p116, %p117
      %s120 = sadd.s32 %s119, 1
      %p123 = scmp.eq.s32.totalorder %s22, 1
      %p124 = scmp.ne.s32.totalorder %s119, %s121
      %p125 = scmp.eq.s32.totalorder %s22, 0
      %p126 = por %p124, %p125
      %p127 = scmp.ne.s32.totalorder %s119, %s121
      %p128 = scmp.eq.s32.totalorder %s27, 1
      %p129 = por %p127, %p128
      %p130 = scmp.ne.s32.totalorder %s121, %s122
      %p131 = scmp.eq.s32.totalorder %s27, 0
      %p132 = por %p130, %p131
      %p133 = scmp.ne.s32.totalorder %s121, %s122
      %p134 = scmp.eq.s32.totalorder %s28, 1
      %p135 = por %p133, %p134
      %p137 = scmp.ne.s32.totalorder %s122, %s136
      %p138 = scmp.eq.s32.totalorder %s28, 0
      %p139 = por %p137, %p138
      %s141 = sadd.s32 %s140, 1
      %p144 = scmp.eq.s32.totalorder %s22, 1
      %p145 = scmp.ne.s32.totalorder %s140, %s142
      %p146 = scmp.eq.s32.totalorder %s22, 0
      %p147 = por %p145, %p146
      %p148 = scmp.ne.s32.totalorder %s140, %s142
      %p149 = scmp.eq.s32.totalorder %s27, 1
      %p150 = por %p148, %p149
      %p151 = scmp.ne.s32.totalorder %s142, %s143
      %p152 = scmp.eq.s32.totalorder %s27, 0
      %p153 = por %p151, %p152
      %p154 = scmp.ne.s32.totalorder %s142, %s143
      %p155 = scmp.eq.s32.totalorder %s28, 1
      %p156 = por %p154, %p155
      %p158 = scmp.ne.s32.totalorder %s143, %s157
      %p159 = scmp.eq.s32.totalorder %s28, 0
      %p160 = por %p158, %p159
      %s162 = sadd.s32 %s161, 1
      %p165 = scmp.eq.s32.totalorder %s22, 1
      %p166 = scmp.ne.s32.totalorder %s161, %s163
      %p167 = scmp.eq.s32.totalorder %s22, 0
      %p168 = por %p166, %p167
      %p169 = scmp.ne.s32.totalorder %s161, %s163
      %p170 = scmp.eq.s32.totalorder %s27, 1
      %p171 = por %p169, %p170
      %p172 = scmp.ne.s32.totalorder %s163, %s164
      %p173 = scmp.eq.s32.totalorder %s27, 0
      %p174 = por %p172, %p173
      %p175 = scmp.ne.s32.totalorder %s163, %s164
      %p176 = scmp.eq.s32.totalorder %s28, 1
      %p177 = por %p175, %p176
      %p179 = scmp.ne.s32.totalorder %s164, %s178
      %p180 = scmp.eq.s32.totalorder %s28, 0
      %p181 = por %p179, %p180
      %s183 = sadd.s32 %s182, 1
      %p186 = scmp.eq.s32.totalorder %s22, 1
      %p187 = scmp.ne.s32.totalorder %s182, %s184
      %p188 = scmp.eq.s32.totalorder %s22, 0
      %p189 = por %p187, %p188
      %p190 = scmp.ne.s32.totalorder %s182, %s184
      %p191 = scmp.eq.s32.totalorder %s27, 1
      %p192 = por %p190, %p191
      %p193 = scmp.ne.s32.totalorder %s184, %s185
      %p194 = scmp.eq.s32.totalorder %s27, 0
      %p195 = por %p193, %p194
      %p196 = scmp.ne.s32.totalorder %s184, %s185
      %p197 = scmp.eq.s32.totalorder %s28, 1
      %p198 = por %p196, %p197
      %p200 = scmp.ne.s32.totalorder %s185, %s199
      %p201 = scmp.eq.s32.totalorder %s28, 0
      %p202 = por %p200, %p201
      %s204 = sadd.s32 %s203, 1
      %p207 = scmp.eq.s32.totalorder %s22, 1
      %p208 = scmp.ne.s32.totalorder %s203, %s205
      %p209 = scmp.eq.s32.totalorder %s22, 0
      %p210 = por %p208, %p209
      %p211 = scmp.ne.s32.totalorder %s203, %s205
      %p212 = scmp.eq.s32.totalorder %s27, 1
      %p213 = por %p211, %p212
      %p214 = scmp.ne.s32.totalorder %s205, %s206
      %p215 = scmp.eq.s32.totalorder %s27, 0
      %p216 = por %p214, %p215
      %p217 = scmp.ne.s32.totalorder %s205, %s206
      %p218 = scmp.eq.s32.totalorder %s28, 1
      %p219 = por %p217, %p218
      %p221 = scmp.ne.s32.totalorder %s206, %s220
      %p222 = scmp.eq.s32.totalorder %s28, 0
      %p223 = por %p221, %p222
      %s225 = sadd.s32 %s224, 1
      %p228 = scmp.eq.s32.totalorder %s22, 1
      %p229 = scmp.ne.s32.totalorder %s224, %s226
      %p230 = scmp.eq.s32.totalorder %s22, 0
      %p231 = por %p229, %p230
      %p232 = scmp.ne.s32.totalorder %s224, %s226
      %p233 = scmp.eq.s32.totalorder %s27, 1
      %p234 = por %p232, %p233
      %p235 = scmp.ne.s32.totalorder %s226, %s227
      %p236 = scmp.eq.s32.totalorder %s27, 0
      %p237 = por %p235, %p236
      %p238 = scmp.ne.s32.totalorder %s226, %s227
      %p239 = scmp.eq.s32.totalorder %s28, 1
      %p240 = por %p238, %p239
      %p242 = scmp.ne.s32.totalorder %s227, %s241
      %p243 = scmp.eq.s32.totalorder %s28, 0
      %p244 = por %p242, %p243
      %s245 = ssub.s32 %s22, %s29
      %p246 = scmp.eq.s32.totalorder %s245, 0
      %s248 = sadd.s32 %s247, 1
      %s249 = scalar_select %p246, %s247, %s248
      %p252 = pneg %p246
      %p253 = scmp.eq.s32.totalorder %s22, 1
      %p254 = por %p252, %p253
      %p255 = scmp.ne.s32.totalorder %s247, %s250
      %p256 = scmp.eq.s32.totalorder %s22, 0
      %p257 = por %p255, %p256
      %p258 = scmp.ne.s32.totalorder %s247, %s250
      %p259 = scmp.eq.s32.totalorder %s27, 1
      %p260 = por %p258, %p259
      %p261 = scmp.ne.s32.totalorder %s250, %s251
      %p262 = scmp.eq.s32.totalorder %s27, 0
      %p263 = por %p261, %p262
      %p264 = scmp.ne.s32.totalorder %s250, %s251
      %p265 = scmp.eq.s32.totalorder %s28, 1
      %p266 = por %p264, %p265
      %p268 = scmp.ne.s32.totalorder %s251, %s267
      %p269 = scmp.eq.s32.totalorder %s28, 0
      %p270 = por %p268, %p269
      %p271 = scmp.le.s32.totalorder 1, %s22
      %p272 = scmp.lt.s32.totalorder %s22, 3
      %p273 = pnand %p271, %p272
      %p274 = pneg %p273
      // Predicated region
      $region9: #{tpu_custom_call.1} parent=5 // pred_check
        _
      $region10: #{tpu_custom_call.1} parent=5 // pred_check_branch
        %276 = sbr.rel (%p273) target = $region12
      $region11: #{tpu_custom_call.1} parent=5 // pred_region
        %s277 = ssub.s32 %s22, 1
        // Predicated region
        $region13: #{tpu_custom_call.1} parent=11 // pred_check
          %p278 = pneg %p69
        $region14: #{tpu_custom_call.1} parent=11 // pred_check_branch
          %280 = sbr.rel (%p278) target = $region16
        $region15: #{tpu_custom_call.1} parent=11 // pred_region
          _
        $region16: #{tpu_custom_call.1} parent=11 // pred_fallthru
          _
        // Predicated region
        $region17: #{tpu_custom_call.1} parent=11 // pred_check
          %p281 = pneg %p90
        $region18: #{tpu_custom_call.1} parent=11 // pred_check_branch
          %283 = sbr.rel (%p281) target = $region20
        $region19: #{tpu_custom_call.1} parent=11 // pred_region
          _
        $region20: #{tpu_custom_call.1} parent=11 // pred_fallthru
          _
        // Predicated region
        $region21: #{tpu_custom_call.1} parent=11 // pred_check
          %p284 = pneg %p111
        $region22: #{tpu_custom_call.1} parent=11 // pred_check_branch
          %286 = sbr.rel (%p284) target = $region24
        $region23: #{tpu_custom_call.1} parent=11 // pred_region
          _
        $region24: #{tpu_custom_call.1} parent=11 // pred_fallthru
          _
        // Predicated region
        $region25: #{tpu_custom_call.1} parent=11 // pred_check
          %p287 = pneg %p132
        $region26: #{tpu_custom_call.1} parent=11 // pred_check_branch
          %289 = sbr.rel (%p287) target = $region28
        $region27: #{tpu_custom_call.1} parent=11 // pred_region
          _
        $region28: #{tpu_custom_call.1} parent=11 // pred_fallthru
          _
        // Predicated region
        $region29: #{tpu_custom_call.1} parent=11 // pred_check
          %p290 = pneg %p153
        $region30: #{tpu_custom_call.1} parent=11 // pred_check_branch
          %292 = sbr.rel (%p290) target = $region32
        $region31: #{tpu_custom_call.1} parent=11 // pred_region
          _
        $region32: #{tpu_custom_call.1} parent=11 // pred_fallthru
          _
        // Predicated region
        $region33: #{tpu_custom_call.1} parent=11 // pred_check
          %p293 = pneg %p174
        $region34: #{tpu_custom_call.1} parent=11 // pred_check_branch
          %295 = sbr.rel (%p293) target = $region36
        $region35: #{tpu_custom_call.1} parent=11 // pred_region
          _
        $region36: #{tpu_custom_call.1} parent=11 // pred_fallthru
          _
        // Predicated region
        $region37: #{tpu_custom_call.1} parent=11 // pred_check
          %p296 = pneg %p195
        $region38: #{tpu_custom_call.1} parent=11 // pred_check_branch
          %298 = sbr.rel (%p296) target = $region40
        $region39: #{tpu_custom_call.1} parent=11 // pred_region
          _
        $region40: #{tpu_custom_call.1} parent=11 // pred_fallthru
          _
        // Predicated region
        $region41: #{tpu_custom_call.1} parent=11 // pred_check
          %p299 = pneg %p216
        $region42: #{tpu_custom_call.1} parent=11 // pred_check_branch
          %301 = sbr.rel (%p299) target = $region44
        $region43: #{tpu_custom_call.1} parent=11 // pred_region
          _
        $region44: #{tpu_custom_call.1} parent=11 // pred_fallthru
          _
        // Predicated region
        $region45: #{tpu_custom_call.1} parent=11 // pred_check
          %p302 = pneg %p237
        $region46: #{tpu_custom_call.1} parent=11 // pred_check_branch
          %304 = sbr.rel (%p302) target = $region48
        $region47: #{tpu_custom_call.1} parent=11 // pred_region
          _
        $region48: #{tpu_custom_call.1} parent=11 // pred_fallthru
          _
      $region12: #{tpu_custom_call.1} parent=5 // pred_fallthru
        _
      %p305 = scmp.lt.s32.totalorder %s22, 2
      // Predicated region
      $region49: #{tpu_custom_call.1} parent=5 // pred_check
        %p306 = pneg %p305
      $region50: #{tpu_custom_call.1} parent=5 // pred_check_branch
        %308 = sbr.rel (%p306) target = $region52
      $region51: #{tpu_custom_call.1} parent=5 // pred_region
        // Predicated region
        $region53: #{tpu_custom_call.1} parent=51 // pred_check
          %p309 = pneg %p42
        $region54: #{tpu_custom_call.1} parent=51 // pred_check_branch
          %311 = sbr.rel (%p309) target = $region56
        $region55: #{tpu_custom_call.1} parent=51 // pred_region
          %s312 = sand.u32 %s32, 1
          %s313 = scalar_lea.sflag [#allocation3], %s312
          %s314 = sand.u32 %s32, 1
          %s315 = smul.addr %s314, 8
          %s316 = scalar_lea.vmem [#allocation2], %s315
          %s318 = ssub.s32 128, 128
          %319 = vsyncadd %s313, %s318
          %s320 = smul.addr %s22, 2
          %s321 = smul.addr %s320, 64
          %s322 = scalar_lea.hbm %s0, %s321
          %s324 = sshll.u32 %s316, 4
          %s325 = int_to_ptr.vmem [resolvable:$true] %s324
          %327 = dma.hbm_to_vmem [thread:$0]  %s322, 128, %s325, %s313
        $region56: #{tpu_custom_call.1} parent=51 // pred_fallthru
          _
      $region52: #{tpu_custom_call.1} parent=5 // pred_fallthru
        _
      %p328 = scmp.le.s32.totalorder 1, %s22
      %p329 = scmp.lt.s32.totalorder %s22, 3
      %p330 = pnand %p328, %p329
      %p331 = pneg %p330
      // Predicated region
      $region57: #{tpu_custom_call.1} parent=5 // pred_check
        _
      $region58: #{tpu_custom_call.1} parent=5 // pred_check_branch
        %333 = sbr.rel (%p330) target = $region60
      $region59: #{tpu_custom_call.1} parent=5 // pred_region
        %s334 = ssub.s32 %s22, 1
        %s335 = sand.u32 %s35, 1
        %s336 = scalar_lea.sflag [#allocation3], %s335
        %s337 = sand.u32 %s35, 1
        %s338 = smul.addr %s337, 8
        %s339 = scalar_lea.vmem [#allocation2], %s338
        // Predicated region
        $region61: #{tpu_custom_call.1} parent=59 // pred_check
          %p340 = pneg %p48
        $region62: #{tpu_custom_call.1} parent=59 // pred_check_branch
          %342 = sbr.rel (%p340) target = $region64
        $region63: #{tpu_custom_call.1} parent=59 // pred_region
          %343 = dma.done %s336, 128
        $region64: #{tpu_custom_call.1} parent=59 // pred_fallthru
          _
        %s344 = sand.u32 %s35, 1
        %s345 = scalar_lea.sflag [#allocation3], %s344
        %s346 = sand.u32 %s35, 1
        %s347 = smul.addr %s346, 8
        %s348 = scalar_lea.vmem [#allocation2], %s347
        %p349 = pneg %p48
        %p350 = pneg %p45
        %p351 = pneg %p69
        %p352 = pneg %p66
        %p353 = pneg %p90
        %p354 = pneg %p87
        %p355 = pneg %p111
        %p356 = pneg %p108
        %p357 = pneg %p132
        %p358 = pneg %p129
        %p359 = pneg %p153
        %p360 = pneg %p150
        %p361 = pneg %p174
        %p362 = pneg %p171
        %p363 = pneg %p195
        %p364 = pneg %p192
        %p365 = pneg %p216
        %p366 = pneg %p213
        %p367 = pneg %p237
        %p368 = pneg %p234
        %p369 = pneg %p263
        %p370 = pneg %p260
        %s371 = sand.u32 %s250, 1
        %s372 = scalar_lea.sflag [#allocation4], %s371
        %s373 = sand.u32 %s250, 1
        %s374 = smul.addr %s373, 8
        %s375 = scalar_lea.vmem [#allocation5], %s374
        %v376 = vld [vmem:[%s339] sm:$0xff]
        %v377 = vld [vmem:[%s1] sm:$0xff]
        %v378 = vld [vmem:[%s1 + $0x8] sm:$0xff]
        %v379 = vld [vmem:[%s1 + $0x10] sm:$0xff]
        %v380 = vld [vmem:[%s1 + $0x18] sm:$0xff]
        %v381 = vld [vmem:[%s1 + $0x20] sm:$0xff]
        %v382 = vld [vmem:[%s1 + $0x28] sm:$0xff]
        %v383 = vld [vmem:[%s1 + $0x30] sm:$0xff]
        %v384 = vld [vmem:[%s1 + $0x38] sm:$0xff]
        %v385 = vld [vmem:[%s1 + $0x40] sm:$0xff]
        %v386 = vld [vmem:[%s1 + $0x48] sm:$0xff]
        %v387 = vld [vmem:[%s1 + $0x50] sm:$0xff]
        %v388 = vld [vmem:[%s1 + $0x58] sm:$0xff]
        %v389 = vld [vmem:[%s1 + $0x60] sm:$0xff]
        %v390 = vld [vmem:[%s1 + $0x68] sm:$0xff]
        %v391 = vld [vmem:[%s1 + $0x70] sm:$0xff]
        %v392 = vld [vmem:[%s1 + $0x78] sm:$0xff]
        %v393 = vld [vmem:[%s1 + $0x80] sm:$0xff]
        %v394 = vld [vmem:[%s1 + $0x88] sm:$0xff]
        %v395 = vld [vmem:[%s1 + $0x90] sm:$0xff]
        %v396 = vld [vmem:[%s1 + $0x98] sm:$0xff]
        %v397 = vld [vmem:[%s1 + $0xa0] sm:$0xff]
        %v398 = vld [vmem:[%s1 + $0xa8] sm:$0xff]
        %v399 = vld [vmem:[%s1 + $0xb0] sm:$0xff]
        %v400 = vld [vmem:[%s1 + $0xb8] sm:$0xff]
        %v401 = vld [vmem:[%s1 + $0xc0] sm:$0xff]
        %v402 = vld [vmem:[%s1 + $0xc8] sm:$0xff]
        %v403 = vld [vmem:[%s1 + $0xd0] sm:$0xff]
        %v404 = vld [vmem:[%s1 + $0xd8] sm:$0xff]
        %v405 = vld [vmem:[%s1 + $0xe0] sm:$0xff]
        %v406 = vld [vmem:[%s1 + $0xe8] sm:$0xff]
        %v407 = vld [vmem:[%s1 + $0xf0] sm:$0xff]
        %v408 = vld [vmem:[%s1 + $0xf8] sm:$0xff]
        %v410 = vcombine.high %v376, %v376
        %412 = vmatprep.subr.mxu0 0.0
        %413 = vmatpush1.msra.mxu0 %v377
        %414 = vmatprep.subr.mxu0 0.0
        %415 = vmatpush1.msra.mxu0 %v378
        %416 = vmatprep.subr.mxu0 0.0
        %417 = vmatpush1.msra.mxu0 %v379
        %418 = vmatprep.subr.mxu0 0.0
        %419 = vmatpush1.msra.mxu0 %v380
        %420 = vmatprep.subr.mxu0 0.0
        %421 = vmatpush1.msra.mxu0 %v381
        %422 = vmatprep.subr.mxu0 0.0
        %423 = vmatpush1.msra.mxu0 %v382
        %424 = vmatprep.subr.mxu0 0.0
        %425 = vmatpush1.msra.mxu0 %v383
        %426 = vmatprep.subr.mxu0 0.0
        %427 = vmatpush1.msra.mxu0 %v384
        %428 = vmatprep.subr.mxu0 0.0
        %429 = vmatpush1.msra.mxu0 %v385
        %430 = vmatprep.subr.mxu0 0.0
        %431 = vmatpush1.msra.mxu0 %v386
        %432 = vmatprep.subr.mxu0 0.0
        %433 = vmatpush1.msra.mxu0 %v387
        %434 = vmatprep.subr.mxu0 0.0
        %435 = vmatpush1.msra.mxu0 %v388
        %436 = vmatprep.subr.mxu0 0.0
        %437 = vmatpush1.msra.mxu0 %v389
        %438 = vmatprep.subr.mxu0 0.0
        %439 = vmatpush1.msra.mxu0 %v390
        %440 = vmatprep.subr.mxu0 0.0
        %441 = vmatpush1.msra.mxu0 %v391
        %442 = vmatprep.subr.mxu0 0.0
        %443 = vmatpush1.msra.mxu0 %v392
        %444 = vmatprep.subr.mxu0 0.0
        %445 = vmatpush1.msra.mxu0 %v393
        %446 = vmatprep.subr.mxu0 0.0
        %447 = vmatpush1.msra.mxu0 %v394
        %448 = vmatprep.subr.mxu0 0.0
        %449 = vmatpush1.msra.mxu0 %v395
        %450 = vmatprep.subr.mxu0 0.0
        %451 = vmatpush1.msra.mxu0 %v396
        %452 = vmatprep.subr.mxu0 0.0
        %453 = vmatpush1.msra.mxu0 %v397
        %454 = vmatprep.subr.mxu0 0.0
        %455 = vmatpush1.msra.mxu0 %v398
        %456 = vmatprep.subr.mxu0 0.0
        %457 = vmatpush1.msra.mxu0 %v399
        %458 = vmatprep.subr.mxu0 0.0
        %459 = vmatpush1.msra.mxu0 %v400
        %460 = vmatprep.subr.mxu0 0.0
        %461 = vmatpush1.msra.mxu0 %v401
        %462 = vmatprep.subr.mxu0 0.0
        %463 = vmatpush1.msra.mxu0 %v402
        %464 = vmatprep.subr.mxu0 0.0
        %465 = vmatpush1.msra.mxu0 %v403
        %466 = vmatprep.subr.mxu0 0.0
        %467 = vmatpush1.msra.mxu0 %v404
        %468 = vmatprep.subr.mxu0 0.0
        %469 = vmatpush1.msra.mxu0 %v405
        %470 = vmatprep.subr.mxu0 0.0
        %471 = vmatpush1.msra.mxu0 %v406
        %472 = vmatprep.subr.mxu0 0.0
        %473 = vmatpush1.msra.mxu0 %v407
        %474 = vmatprep.subr.mxu0 0.0
        %475 = vmatpush1.msra.mxu0 %v408
        %476 = vmatprep.mubr.f32.mxu0 %v410
        %477 = vmatmul.mubr.f32.gmra.mrb[0].mxu0 %v376
        %v478 = vpop.f32.mrb[0].mxu0
        %v479 = vadd.f32 0.0, %v478
        %v480 = vpop.f32.mrb[0].mxu0
        %481 = vdwg.mxu0
        %v482 = vmul.f32 %v479, 0.0625
        %v483 = vld [vmem:[%s4] sm:$0xff]
        %v484 = vld [vmem:[%s5] sm:$0xff]
        %486 = vset.pattern.permute.xlu0 0
        %487 = vperm.xlu0 %486, %v484
        %v488 = vpop.permute.xlu0 %487
        %vm490 = vcmask 31744
        %v492 = vsel %vm490, %v483, 0
        %vm494 = vcmask 1043456
        %v496 = vsel %vm494, %v482, 0
        %498 = vmatprep.subr.mxu0 0.0
        %499 = vmatpush1.msra.mxu0 %v496
        %500 = vmatprep.subr.mxu0 0.0
        %501 = vmatpush1.msra.mxu0 0.0
        %502 = vmatprep.subr.mxu0 0.0
        %503 = vmatpush1.msra.mxu0 0.0
        %504 = vmatprep.subr.mxu0 0.0
        %505 = vmatpush1.msra.mxu0 0.0
        %506 = vmatprep.subr.mxu0 0.0
        %507 = vmatpush1.msra.mxu0 0.0
        %508 = vmatprep.subr.mxu0 0.0
        %509 = vmatpush1.msra.mxu0 0.0
        %510 = vmatprep.subr.mxu0 0.0
        %511 = vmatpush1.msra.mxu0 0.0
        %512 = vmatprep.subr.mxu0 0.0
        %513 = vmatpush1.msra.mxu0 0.0
        %514 = vmatprep.subr.mxu0 0.0
        %515 = vmatpush1.msra.mxu0 0.0
        %516 = vmatprep.subr.mxu0 0.0
        %517 = vmatpush1.msra.mxu0 0.0
        %518 = vmatprep.subr.mxu0 0.0
        %519 = vmatpush1.msra.mxu0 0.0
        %520 = vmatprep.subr.mxu0 0.0
        %521 = vmatpush1.msra.mxu0 0.0
        %522 = vmatprep.subr.mxu0 0.0
        %523 = vmatpush1.msra.mxu0 0.0
        %524 = vmatprep.subr.mxu0 0.0
        %525 = vmatpush1.msra.mxu0 0.0
        %526 = vmatprep.subr.mxu0 0.0
        %527 = vmatpush1.msra.mxu0 0.0
        %528 = vmatprep.subr.mxu0 0.0
        %529 = vmatpush1.msra.mxu0 0.0
        %530 = vmatprep.subr.mxu0 0.0
        %531 = vmatpush1.msra.mxu0 0.0
        %532 = vmatprep.subr.mxu0 0.0
        %533 = vmatpush1.msra.mxu0 0.0
        %534 = vmatprep.subr.mxu0 0.0
        %535 = vmatpush1.msra.mxu0 0.0
        %536 = vmatprep.subr.mxu0 0.0
        %537 = vmatpush1.msra.mxu0 0.0
        %538 = vmatprep.subr.mxu0 0.0
        %539 = vmatpush1.msra.mxu0 0.0
        %540 = vmatprep.subr.mxu0 0.0
        %541 = vmatpush1.msra.mxu0 0.0
        %542 = vmatprep.subr.mxu0 0.0
        %543 = vmatpush1.msra.mxu0 0.0
        %544 = vmatprep.subr.mxu0 0.0
        %545 = vmatpush1.msra.mxu0 0.0
        %546 = vmatprep.subr.mxu0 0.0
        %547 = vmatpush1.msra.mxu0 0.0
        %548 = vmatprep.subr.mxu0 0.0
        %549 = vmatpush1.msra.mxu0 0.0
        %550 = vmatprep.subr.mxu0 0.0
        %551 = vmatpush1.msra.mxu0 0.0
        %552 = vmatprep.subr.mxu0 0.0
        %553 = vmatpush1.msra.mxu0 0.0
        %554 = vmatprep.subr.mxu0 0.0
        %555 = vmatpush1.msra.mxu0 0.0
        %556 = vmatprep.subr.mxu0 0.0
        %557 = vmatpush1.msra.mxu0 0.0
        %558 = vmatprep.subr.mxu0 0.0
        %559 = vmatpush1.msra.mxu0 0.0
        %560 = vmatprep.subr.mxu0 0.0
        %561 = vmatpush1.msra.mxu0 0.0
        %562 = vmatprep.mubr.f32.mxu0 0.0
        %563 = vmatmul.mubr.f32.gmra.mrb[0].mxu0 %v492
        %v564 = vpop.f32.mrb[0].mxu0
        %v565 = vadd.f32 %v488, %v564
        %v566 = vpop.f32.mrb[0].mxu0
        %567 = vdwg.mxu0
        %v568 = vadd.f32 %v565, 3.0
        %v569 = vmax.f32 %v568, 0.0
        %v570 = vmin.f32 %v569, 6.0
        %v571 = vmul.f32 %v565, %v570
        %v572 = vmul.f32 %v571, 0.16666667
        %v573 = vld [vmem:[%s6] sm:$0xf]
        %v574 = vld [vmem:[%s8] sm:$0xf]
        %v575 = vld [vmem:[%s7] sm:$0xf]
        %577 = vset.pattern.permute.xlu0 0
        %578 = vperm.xlu0 %577, %v575
        %v579 = vpop.permute.xlu0 %578
        %vm581 = vcmask 64512
        %v583 = vsel %vm581, %v573, 0
        %585 = vmatprep.subr.mxu0 0.0
        %586 = vmatpush1.msra.mxu0 %v572
        %587 = vmatprep.subr.mxu0 0.0
        %588 = vmatpush1.msra.mxu0 0.0
        %589 = vmatprep.subr.mxu0 0.0
        %590 = vmatpush1.msra.mxu0 0.0
        %591 = vmatprep.subr.mxu0 0.0
        %592 = vmatpush1.msra.mxu0 0.0
        %593 = vmatprep.subr.mxu0 0.0
        %594 = vmatpush1.msra.mxu0 0.0
        %595 = vmatprep.subr.mxu0 0.0
        %596 = vmatpush1.msra.mxu0 0.0
        %597 = vmatprep.subr.mxu0 0.0
        %598 = vmatpush1.msra.mxu0 0.0
        %599 = vmatprep.subr.mxu0 0.0
        %600 = vmatpush1.msra.mxu0 0.0
        %601 = vmatprep.subr.mxu0 0.0
        %602 = vmatpush1.msra.mxu0 0.0
        %603 = vmatprep.subr.mxu0 0.0
        %604 = vmatpush1.msra.mxu0 0.0
        %605 = vmatprep.subr.mxu0 0.0
        %606 = vmatpush1.msra.mxu0 0.0
        %607 = vmatprep.subr.mxu0 0.0
        %608 = vmatpush1.msra.mxu0 0.0
        %609 = vmatprep.subr.mxu0 0.0
        %610 = vmatpush1.msra.mxu0 0.0
        %611 = vmatprep.subr.mxu0 0.0
        %612 = vmatpush1.msra.mxu0 0.0
        %613 = vmatprep.subr.mxu0 0.0
        %614 = vmatpush1.msra.mxu0 0.0
        %615 = vmatprep.subr.mxu0 0.0
        %616 = vmatpush1.msra.mxu0 0.0
        %617 = vmatprep.subr.mxu0 0.0
        %618 = vmatpush1.msra.mxu0 0.0
        %619 = vmatprep.subr.mxu0 0.0
        %620 = vmatpush1.msra.mxu0 0.0
        %621 = vmatprep.subr.mxu0 0.0
        %622 = vmatpush1.msra.mxu0 0.0
        %623 = vmatprep.subr.mxu0 0.0
        %624 = vmatpush1.msra.mxu0 0.0
        %625 = vmatprep.subr.mxu0 0.0
        %626 = vmatpush1.msra.mxu0 0.0
        %627 = vmatprep.subr.mxu0 0.0
        %628 = vmatpush1.msra.mxu0 0.0
        %629 = vmatprep.subr.mxu0 0.0
        %630 = vmatpush1.msra.mxu0 0.0
        %631 = vmatprep.subr.mxu0 0.0
        %632 = vmatpush1.msra.mxu0 0.0
        %633 = vmatprep.subr.mxu0 0.0
        %634 = vmatpush1.msra.mxu0 0.0
        %635 = vmatprep.subr.mxu0 0.0
        %636 = vmatpush1.msra.mxu0 0.0
        %637 = vmatprep.subr.mxu0 0.0
        %638 = vmatpush1.msra.mxu0 0.0
        %639 = vmatprep.subr.mxu0 0.0
        %640 = vmatpush1.msra.mxu0 0.0
        %641 = vmatprep.subr.mxu0 0.0
        %642 = vmatpush1.msra.mxu0 0.0
        %643 = vmatprep.subr.mxu0 0.0
        %644 = vmatpush1.msra.mxu0 0.0
        %645 = vmatprep.subr.mxu0 0.0
        %646 = vmatpush1.msra.mxu0 0.0
        %647 = vmatprep.subr.mxu0 0.0
        %648 = vmatpush1.msra.mxu0 0.0
        %649 = vmatprep.mubr.f32.mxu0 0.0
        %650 = vmatmul.mubr.f32.gmra.mrb[0].mxu0 %v583
        %v651 = vpop.f32.mrb[0].mxu0
        %v652 = vadd.f32 %v579, %v651
        %v653 = vpop.f32.mrb[0].mxu0
        %654 = vdwg.mxu0
        %v655 = vxor.u32 %v652, 2147483648
        %v656 = vmul.f32 %v655, 1.442695
        %v657 = vpow.pop %v656
        %v658 = vadd.f32 %v657, 1.0
        %v659 = vrcp.pop %v658
        %v660 = vmul.f32 1.0, %v659
        %v661 = vld [vmem:[%s9] sm:$0xf]
        %663 = vset.pattern.permute.xlu0 0
        %664 = vperm.xlu0 %663, %v661
        %v665 = vpop.permute.xlu0 %664
        %668 = vrot.lane.b32.xlu0 %v572, 112
        %v669 = vpop.permute.xlu0 %668
        %v672 = vsel %vm581, %v574, 0
        %674 = vmatprep.subr.mxu0 0.0
        %675 = vmatpush1.msra.mxu0 %v669
        %676 = vmatprep.subr.mxu0 0.0
        %677 = vmatpush1.msra.mxu0 0.0
        %678 = vmatprep.subr.mxu0 0.0
        %679 = vmatpush1.msra.mxu0 0.0
        %680 = vmatprep.subr.mxu0 0.0
        %681 = vmatpush1.msra.mxu0 0.0
        %682 = vmatprep.subr.mxu0 0.0
        %683 = vmatpush1.msra.mxu0 0.0
        %684 = vmatprep.subr.mxu0 0.0
        %685 = vmatpush1.msra.mxu0 0.0
        %686 = vmatprep.subr.mxu0 0.0
        %687 = vmatpush1.msra.mxu0 0.0
        %688 = vmatprep.subr.mxu0 0.0
        %689 = vmatpush1.msra.mxu0 0.0
        %690 = vmatprep.subr.mxu0 0.0
        %691 = vmatpush1.msra.mxu0 0.0
        %692 = vmatprep.subr.mxu0 0.0
        %693 = vmatpush1.msra.mxu0 0.0
        %694 = vmatprep.subr.mxu0 0.0
        %695 = vmatpush1.msra.mxu0 0.0
        %696 = vmatprep.subr.mxu0 0.0
        %697 = vmatpush1.msra.mxu0 0.0
        %698 = vmatprep.subr.mxu0 0.0
        %699 = vmatpush1.msra.mxu0 0.0
        %700 = vmatprep.subr.mxu0 0.0
        %701 = vmatpush1.msra.mxu0 0.0
        %702 = vmatprep.subr.mxu0 0.0
        %703 = vmatpush1.msra.mxu0 0.0
        %704 = vmatprep.subr.mxu0 0.0
        %705 = vmatpush1.msra.mxu0 0.0
        %706 = vmatprep.subr.mxu0 0.0
        %707 = vmatpush1.msra.mxu0 0.0
        %708 = vmatprep.subr.mxu0 0.0
        %709 = vmatpush1.msra.mxu0 0.0
        %710 = vmatprep.subr.mxu0 0.0
        %711 = vmatpush1.msra.mxu0 0.0
        %712 = vmatprep.subr.mxu0 0.0
        %713 = vmatpush1.msra.mxu0 0.0
        %714 = vmatprep.subr.mxu0 0.0
        %715 = vmatpush1.msra.mxu0 0.0
        %716 = vmatprep.subr.mxu0 0.0
        %717 = vmatpush1.msra.mxu0 0.0
        %718 = vmatprep.subr.mxu0 0.0
        %719 = vmatpush1.msra.mxu0 0.0
        %720 = vmatprep.subr.mxu0 0.0
        %721 = vmatpush1.msra.mxu0 0.0
        %722 = vmatprep.subr.mxu0 0.0
        %723 = vmatpush1.msra.mxu0 0.0
        %724 = vmatprep.subr.mxu0 0.0
        %725 = vmatpush1.msra.mxu0 0.0
        %726 = vmatprep.subr.mxu0 0.0
        %727 = vmatpush1.msra.mxu0 0.0
        %728 = vmatprep.subr.mxu0 0.0
        %729 = vmatpush1.msra.mxu0 0.0
        %730 = vmatprep.subr.mxu0 0.0
        %731 = vmatpush1.msra.mxu0 0.0
        %732 = vmatprep.subr.mxu0 0.0
        %733 = vmatpush1.msra.mxu0 0.0
        %734 = vmatprep.subr.mxu0 0.0
        %735 = vmatpush1.msra.mxu0 0.0
        %736 = vmatprep.subr.mxu0 0.0
        %737 = vmatpush1.msra.mxu0 0.0
        %738 = vmatprep.mubr.f32.mxu0 0.0
        %739 = vmatmul.mubr.f32.gmra.mrb[0].mxu0 %v672
        %v740 = vpop.f32.mrb[0].mxu0
        %v741 = vadd.f32 %v665, %v740
        %v742 = vpop.f32.mrb[0].mxu0
        %743 = vdwg.mxu0
        %v744 = vxor.u32 %v741, 2147483648
        %v745 = vmul.f32 %v744, 1.442695
        %v746 = vpow.pop %v745
        %v747 = vadd.f32 %v746, 1.0
        %v748 = vrcp.pop %v747
        %v749 = vmul.f32 1.0, %v748
        %v750 = vld [vmem:[%s2] sm:$0xff]
        %v751 = vld [vmem:[%s2 + $0x8] sm:$0xff]
        %v752 = vld [vmem:[%s2 + $0x10] sm:$0xff]
        %v753 = vld [vmem:[%s2 + $0x18] sm:$0xff]
        %vm754 = vcmask 130048
        %v756 = vsel %vm754, %v660, 0
        %758 = vmatprep.subr.mxu0 %v751
        %759 = vmatpush1.msra.mxu0 %v750
        %760 = vmatprep.subr.mxu0 %v753
        %761 = vmatpush1.msra.mxu0 %v752
        %762 = vmatprep.subr.mxu0 0.0
        %763 = vmatpush1.msra.mxu0 0.0
        %764 = vmatprep.subr.mxu0 0.0
        %765 = vmatpush1.msra.mxu0 0.0
        %766 = vmatprep.subr.mxu0 0.0
        %767 = vmatpush1.msra.mxu0 0.0
        %768 = vmatprep.subr.mxu0 0.0
        %769 = vmatpush1.msra.mxu0 0.0
        %770 = vmatprep.subr.mxu0 0.0
        %771 = vmatpush1.msra.mxu0 0.0
        %772 = vmatprep.subr.mxu0 0.0
        %773 = vmatpush1.msra.mxu0 0.0
        %774 = vmatprep.subr.mxu0 0.0
        %775 = vmatpush1.msra.mxu0 0.0
        %776 = vmatprep.subr.mxu0 0.0
        %777 = vmatpush1.msra.mxu0 0.0
        %778 = vmatprep.subr.mxu0 0.0
        %779 = vmatpush1.msra.mxu0 0.0
        %780 = vmatprep.subr.mxu0 0.0
        %781 = vmatpush1.msra.mxu0 0.0
        %782 = vmatprep.subr.mxu0 0.0
        %783 = vmatpush1.msra.mxu0 0.0
        %784 = vmatprep.subr.mxu0 0.0
        %785 = vmatpush1.msra.mxu0 0.0
        %786 = vmatprep.subr.mxu0 0.0
        %787 = vmatpush1.msra.mxu0 0.0
        %788 = vmatprep.subr.mxu0 0.0
        %789 = vmatpush1.msra.mxu0 0.0
        %790 = vmatprep.subr.mxu0 0.0
        %791 = vmatpush1.msra.mxu0 0.0
        %792 = vmatprep.subr.mxu0 0.0
        %793 = vmatpush1.msra.mxu0 0.0
        %794 = vmatprep.subr.mxu0 0.0
        %795 = vmatpush1.msra.mxu0 0.0
        %796 = vmatprep.subr.mxu0 0.0
        %797 = vmatpush1.msra.mxu0 0.0
        %798 = vmatprep.subr.mxu0 0.0
        %799 = vmatpush1.msra.mxu0 0.0
        %800 = vmatprep.subr.mxu0 0.0
        %801 = vmatpush1.msra.mxu0 0.0
        %802 = vmatprep.subr.mxu0 0.0
        %803 = vmatpush1.msra.mxu0 0.0
        %804 = vmatprep.subr.mxu0 0.0
        %805 = vmatpush1.msra.mxu0 0.0
        %806 = vmatprep.subr.mxu0 0.0
        %807 = vmatpush1.msra.mxu0 0.0
        %808 = vmatprep.subr.mxu0 0.0
        %809 = vmatpush1.msra.mxu0 0.0
        %810 = vmatprep.subr.mxu0 0.0
        %811 = vmatpush1.msra.mxu0 0.0
        %812 = vmatprep.subr.mxu0 0.0
        %813 = vmatpush1.msra.mxu0 0.0
        %814 = vmatprep.subr.mxu0 0.0
        %815 = vmatpush1.msra.mxu0 0.0
        %816 = vmatprep.subr.mxu0 0.0
        %817 = vmatpush1.msra.mxu0 0.0
        %818 = vmatprep.subr.mxu0 0.0
        %819 = vmatpush1.msra.mxu0 0.0
        %820 = vmatprep.subr.mxu0 0.0
        %821 = vmatpush1.msra.mxu0 0.0
        %822 = vmatprep.mubr.f32.mxu0 0.0
        %823 = vmatmul.mubr.f32.gmra.mrb[0].mxu0 %v756
        %v824 = vpop.f32.mrb[0].mxu0
        %v825 = vadd.f32 0.0, %v824
        %v826 = vpop.f32.mrb[0].mxu0
        %v827 = vadd.f32 0.0, %v826
        %828 = vdwg.mxu0
        %v829 = vld [vmem:[%s3] sm:$0xff]
        %v830 = vld [vmem:[%s3 + $0x8] sm:$0xff]
        %v831 = vld [vmem:[%s3 + $0x10] sm:$0xff]
        %v832 = vld [vmem:[%s3 + $0x18] sm:$0xff]
        %v834 = vsel %vm754, %v749, 0
        %836 = vmatprep.subr.mxu0 %v830
        %837 = vmatpush1.msra.mxu0 %v829
        %838 = vmatprep.subr.mxu0 %v832
        %839 = vmatpush1.msra.mxu0 %v831
        %840 = vmatprep.subr.mxu0 0.0
        %841 = vmatpush1.msra.mxu0 0.0
        %842 = vmatprep.subr.mxu0 0.0
        %843 = vmatpush1.msra.mxu0 0.0
        %844 = vmatprep.subr.mxu0 0.0
        %845 = vmatpush1.msra.mxu0 0.0
        %846 = vmatprep.subr.mxu0 0.0
        %847 = vmatpush1.msra.mxu0 0.0
        %848 = vmatprep.subr.mxu0 0.0
        %849 = vmatpush1.msra.mxu0 0.0
        %850 = vmatprep.subr.mxu0 0.0
        %851 = vmatpush1.msra.mxu0 0.0
        %852 = vmatprep.subr.mxu0 0.0
        %853 = vmatpush1.msra.mxu0 0.0
        %854 = vmatprep.subr.mxu0 0.0
        %855 = vmatpush1.msra.mxu0 0.0
        %856 = vmatprep.subr.mxu0 0.0
        %857 = vmatpush1.msra.mxu0 0.0
        %858 = vmatprep.subr.mxu0 0.0
        %859 = vmatpush1.msra.mxu0 0.0
        %860 = vmatprep.subr.mxu0 0.0
        %861 = vmatpush1.msra.mxu0 0.0
        %862 = vmatprep.subr.mxu0 0.0
        %863 = vmatpush1.msra.mxu0 0.0
        %864 = vmatprep.subr.mxu0 0.0
        %865 = vmatpush1.msra.mxu0 0.0
        %866 = vmatprep.subr.mxu0 0.0
        %867 = vmatpush1.msra.mxu0 0.0
        %868 = vmatprep.subr.mxu0 0.0
        %869 = vmatpush1.msra.mxu0 0.0
        %870 = vmatprep.subr.mxu0 0.0
        %871 = vmatpush1.msra.mxu0 0.0
        %872 = vmatprep.subr.mxu0 0.0
        %873 = vmatpush1.msra.mxu0 0.0
        %874 = vmatprep.subr.mxu0 0.0
        %875 = vmatpush1.msra.mxu0 0.0
        %876 = vmatprep.subr.mxu0 0.0
        %877 = vmatpush1.msra.mxu0 0.0
        %878 = vmatprep.subr.mxu0 0.0
        %879 = vmatpush1.msra.mxu0 0.0
        %880 = vmatprep.subr.mxu0 0.0
        %881 = vmatpush1.msra.mxu0 0.0
        %882 = vmatprep.subr.mxu0 0.0
        %883 = vmatpush1.msra.mxu0 0.0
        %884 = vmatprep.subr.mxu0 0.0
        %885 = vmatpush1.msra.mxu0 0.0
        %886 = vmatprep.subr.mxu0 0.0
        %887 = vmatpush1.msra.mxu0 0.0
        %888 = vmatprep.subr.mxu0 0.0
        %889 = vmatpush1.msra.mxu0 0.0
        %890 = vmatprep.subr.mxu0 0.0
        %891 = vmatpush1.msra.mxu0 0.0
        %892 = vmatprep.subr.mxu0 0.0
        %893 = vmatpush1.msra.mxu0 0.0
        %894 = vmatprep.subr.mxu0 0.0
        %895 = vmatpush1.msra.mxu0 0.0
        %896 = vmatprep.subr.mxu0 0.0
        %897 = vmatpush1.msra.mxu0 0.0
        %898 = vmatprep.subr.mxu0 0.0
        %899 = vmatpush1.msra.mxu0 0.0
        %900 = vmatprep.mubr.f32.mxu0 0.0
        %901 = vmatmul.mubr.f32.gmra.mrb[0].mxu0 %v834
        %v902 = vpop.f32.mrb[0].mxu0
        %v903 = vadd.f32 0.0, %v902
        %v904 = vpop.f32.mrb[0].mxu0
        %v905 = vadd.f32 0.0, %v904
        %906 = vdwg.mxu0
        %v907 = vmul.f32 %v825, %v903
        %v908 = vmul.f32 %v827, %v905
        %v911 = vcombine.low %v907, %v908
        %v913 = vmul.f32 %v376, %v911
        %914 = vst [vmem:[%s375] sm:$0xff] %v913
        %s915 = sand.u32 %s250, 1
        %s916 = scalar_lea.sflag [#allocation4], %s915
        %s917 = sand.u32 %s250, 1
        %s918 = smul.addr %s917, 8
        %s919 = scalar_lea.vmem [#allocation5], %s918
        // Predicated region
        $region65: #{tpu_custom_call.1} parent=59 // pred_check
          %p920 = pneg %p260
        $region66: #{tpu_custom_call.1} parent=59 // pred_check_branch
          %922 = sbr.rel (%p920) target = $region68
        $region67: #{tpu_custom_call.1} parent=59 // pred_region
          %s924 = ssub.s32 128, 128
          %925 = vsyncadd %s916, %s924
          %s926 = smul.addr %s27, 2
          %s927 = smul.addr %s926, 64
          %s928 = scalar_lea.hbm %s10, %s927
          %s930 = sshll.u32 %s919, 4
          %s931 = int_to_ptr.vmem [resolvable:$true] %s930
          %933 = dma.vmem_to_hbm [thread:$0]  %s931, 128, %s928, %s916
        $region68: #{tpu_custom_call.1} parent=59 // pred_fallthru
          _
      $region60: #{tpu_custom_call.1} parent=5 // pred_fallthru
        _
      %p934 = scmp.le.s32.totalorder 2, %s22
      // Predicated region
      $region69: #{tpu_custom_call.1} parent=5 // pred_check
        %p935 = pneg %p934
      $region70: #{tpu_custom_call.1} parent=5 // pred_check_branch
        %937 = sbr.rel (%p935) target = $region72
      $region71: #{tpu_custom_call.1} parent=5 // pred_region
        %s938 = ssub.s32 %s22, 2
        // Predicated region
        $region73: #{tpu_custom_call.1} parent=71 // pred_check
          %p939 = pneg %p266
        $region74: #{tpu_custom_call.1} parent=71 // pred_check_branch
          %941 = sbr.rel (%p939) target = $region76
        $region75: #{tpu_custom_call.1} parent=71 // pred_region
          %s942 = sand.u32 %s251, 1
          %s943 = scalar_lea.sflag [#allocation4], %s942
          %s944 = sand.u32 %s251, 1
          %s945 = smul.addr %s944, 8
          %s946 = scalar_lea.vmem [#allocation5], %s945
          %947 = dma.done %s943, 128
        $region76: #{tpu_custom_call.1} parent=71 // pred_fallthru
          _
      $region72: #{tpu_custom_call.1} parent=5 // pred_fallthru
        _
    $region6: #{tpu_custom_call.1} parent=1 // loop_footer
      %s26 = sadd.s32 1, %s22
    $region7: #{tpu_custom_call.1} parent=1 // loop_footer_branch
      %21 = sbr.rel target = $region3
    $region8: #{tpu_custom_call.1} parent=1 // loop_exit
      _
    %948 = vsyncpa [#allocation3], 1
    %s949 = scalar_lea.sflag [#allocation3], 1
    %950 = vsyncpa %s949, 1
    %951 = vsyncpa [#allocation4], 1
    %s952 = scalar_lea.sflag [#allocation4], 1
    %953 = vsyncpa %s952, 1

</llo_original>
